<compile_context>
chip_gen: v7x
topology: tpu7x:2x2x1
jax: 0.10.0
libtpu: 0.0.40
codegen_flags: <defaults>
</compile_context>

<pallas_src>
import functools

import jax
import jax.numpy as jnp
import numpy as np
from jax import lax
from jax.experimental import pallas as pl
from jax.experimental.pallas import tpu as pltpu

EPS = 1e-5
LANE = 128


# ------------------------------- small utils -------------------------------

def _round_up(x, m):
    return (x + m - 1) // m * m


def _vmem_limit_bytes():
    """Most of physical VMEM minus headroom; handles 64 MiB (v7x) and 128 MiB parts."""
    cap = 64 * 1024 * 1024
    try:
        info = pltpu.get_tpu_info()
        cap = int(getattr(info, "vmem_capacity_bytes", cap))
    except Exception:
        pass
    return int(min(max(cap - 12 * 1024 * 1024, 32 * 1024 * 1024), 100 * 1024 * 1024))


def _cparams():
    return pltpu.CompilerParams(dimension_semantics=("parallel",),
                                vmem_limit_bytes=_vmem_limit_bytes())


def _pad_last(a, n):
    return jnp.pad(a, [(0, 0)] * (a.ndim - 1) + [(0, n - a.shape[-1])])


def _pad1(a, n):
    a = a.reshape(-1).astype(jnp.float32)
    return jnp.pad(a, (0, n - a.shape[0]))


# ----------------------------- Pallas kernels ------------------------------

def _stats_rows(y_f32):
    """(8, C) stats block: row0 = per-channel sum, row1 = sum of squares,
    rows 2..7 explicitly zero (no stale VMEM flushed to HBM)."""
    su = jnp.sum(y_f32, axis=0, keepdims=True)
    sq = jnp.sum(y_f32 * y_f32, axis=0, keepdims=True)
    zeros = jnp.zeros((6, y_f32.shape[-1]), jnp.float32)
    return jnp.concatenate([su, sq, zeros], axis=0)


def _conv1x1_stats_kernel(x_ref, w_ref, y_ref, st_ref):
    """Per-image 1x1 conv: y = x @ w (bf16 MXU operands, f32 accumulation),
    stored bf16, plus per-channel sum / sumsq of the stored (rounded) values."""
    y = jnp.dot(x_ref[0], w_ref[...], preferred_element_type=jnp.float32)
    yb = y.astype(jnp.bfloat16)
    y_ref[0] = yb
    st_ref[0] = _stats_rows(yb.astype(jnp.float32))


def _act_conv1x1_stats_kernel(x_ref, sc_ref, sh_ref, w_ref, y_ref, st_ref):
    """Same, with the producer's BN scale/shift + ReLU folded into the load path."""
    a = jnp.maximum(x_ref[0].astype(jnp.float32) * sc_ref[...] + sh_ref[...], 0.0)
    y = jnp.dot(a.astype(jnp.bfloat16), w_ref[...],
                preferred_element_type=jnp.float32)
    yb = y.astype(jnp.bfloat16)
    y_ref[0] = yb
    st_ref[0] = _stats_rows(yb.astype(jnp.float32))


def _tap_conv_stats_kernel(x_ref, sc_ref, sh_ref, w_ref, y_ref, st_ref, pad_ref,
                           *, ho, wo, kh, kw):
    """3x3 conv (or its 2x2-tap space-to-depth rewrite for stride 2) as kh*kw
    shifted tap matmuls over an in-VMEM zero-padded activated image.  The
    producer's BN scale/shift + ReLU is folded into the load path; the raw conv
    output (bf16) plus its BN statistics are emitted."""
    hi, wi, ci = x_ref.shape[1], x_ref.shape[2], x_ref.shape[3]
    co = w_ref.shape[-1]
    a = jnp.maximum(x_ref[0].astype(jnp.float32) * sc_ref[...] + sh_ref[...], 0.0)
    # In-VMEM "im2col": zero-padded activated image (f32 scratch keeps the
    # windowed stores/loads on simple, unpacked sublane layouts).
    pad_ref[...] = jnp.zeros(pad_ref.shape, pad_ref.dtype)
    pad_ref[1:hi + 1, 1:wi + 1, :] = a
    acc = jnp.zeros((ho * wo, co), jnp.float32)
    for ka in range(kh):
        for kb in range(kw):
            lhs = pad_ref[ka:ka + ho, kb:kb + wo, :].reshape(ho * wo, ci)
            acc = acc + jnp.dot(lhs.astype(jnp.bfloat16), w_ref[ka * kw + kb],
                                preferred_element_type=jnp.float32)
    yb = acc.astype(jnp.bfloat16)
    y_ref[0] = yb
    st_ref[0] = _stats_rows(yb.astype(jnp.float32))


def _bn_add_relu_kernel(y3_ref, sc3_ref, sh3_ref, ys_ref, scs_ref, shs_ref, o_ref):
    main = y3_ref[0].astype(jnp.float32) * sc3_ref[...] + sh3_ref[...]
    short = ys_ref[0].astype(jnp.float32) * scs_ref[...] + shs_ref[...]
    o_ref[0] = jnp.maximum(main + short, 0.0).astype(o_ref.dtype)


def _bn_addid_relu_kernel(y3_ref, sc3_ref, sh3_ref, xs_ref, o_ref):
    o_ref[0] = jnp.maximum(
        y3_ref[0].astype(jnp.float32) * sc3_ref[...] + sh3_ref[...]
        + xs_ref[0].astype(jnp.float32), 0.0).astype(o_ref.dtype)


# --------------------------- pallas_call wrappers ---------------------------

def _conv1x1_stats(x, w):
    """x: (N, M, K) bf16; w: (K, Co) bf16 -> y: (N, M, Co) bf16, stats: (N, 8, Co)."""
    n, m, k = x.shape
    co = w.shape[1]
    cost = pl.CostEstimate(flops=2 * n * m * k * co, transcendentals=0,
                           bytes_accessed=int(2 * (x.size + w.size + n * m * co)))
    return pl.pallas_call(
        _conv1x1_stats_kernel,
        out_shape=(jax.ShapeDtypeStruct((n, m, co), jnp.bfloat16),
                   jax.ShapeDtypeStruct((n, 8, co), jnp.float32)),
        grid_spec=pltpu.PrefetchScalarGridSpec(
            num_scalar_prefetch=0, grid=(n,),
            in_specs=[pl.BlockSpec((1, m, k), lambda i: (i, 0, 0)),
                      pl.BlockSpec((k, co), lambda i: (0, 0))],
            out_specs=(pl.BlockSpec((1, m, co), lambda i: (i, 0, 0)),
                       pl.BlockSpec((1, 8, co), lambda i: (i, 0, 0)))),
        compiler_params=_cparams(),
        cost_estimate=cost,
    )(x, w)


def _act_conv1x1_stats(x, sc, sh, w):
    """1x1 conv with the producer's BN scale/shift + ReLU folded into the loads."""
    n, m, k = x.shape
    co = w.shape[1]
    cost = pl.CostEstimate(flops=2 * n * m * k * co, transcendentals=0,
                           bytes_accessed=int(2 * (x.size + w.size + n * m * co)))
    return pl.pallas_call(
        _act_conv1x1_stats_kernel,
        out_shape=(jax.ShapeDtypeStruct((n, m, co), jnp.bfloat16),
                   jax.ShapeDtypeStruct((n, 8, co), jnp.float32)),
        grid_spec=pltpu.PrefetchScalarGridSpec(
            num_scalar_prefetch=0, grid=(n,),
            in_specs=[pl.BlockSpec((1, m, k), lambda i: (i, 0, 0)),
                      pl.BlockSpec((1, k), lambda i: (0, 0)),
                      pl.BlockSpec((1, k), lambda i: (0, 0)),
                      pl.BlockSpec((k, co), lambda i: (0, 0))],
            out_specs=(pl.BlockSpec((1, m, co), lambda i: (i, 0, 0)),
                       pl.BlockSpec((1, 8, co), lambda i: (i, 0, 0)))),
        compiler_params=_cparams(),
        cost_estimate=cost,
    )(x, sc, sh, w)


def _tap_conv_stats(x, sc, sh, wtaps, ho, wo, kh, kw):
    """x: (N, Hi, Wi, Ci) bf16 raw producer output; wtaps: (kh*kw, Ci, Co) bf16."""
    n, hi, wi, ci = x.shape
    co = wtaps.shape[-1]
    kernel = functools.partial(_tap_conv_stats_kernel, ho=ho, wo=wo, kh=kh, kw=kw)
    cost = pl.CostEstimate(flops=2 * n * ho * wo * kh * kw * ci * co,
                           transcendentals=0,
                           bytes_accessed=int(2 * (x.size + wtaps.size + n * ho * wo * co)))
    return pl.pallas_call(
        kernel,
        out_shape=(jax.ShapeDtypeStruct((n, ho * wo, co), jnp.bfloat16),
                   jax.ShapeDtypeStruct((n, 8, co), jnp.float32)),
        grid_spec=pltpu.PrefetchScalarGridSpec(
            num_scalar_prefetch=0, grid=(n,),
            in_specs=[pl.BlockSpec((1, hi, wi, ci), lambda i: (i, 0, 0, 0)),
                      pl.BlockSpec((1, ci), lambda i: (0, 0)),
                      pl.BlockSpec((1, ci), lambda i: (0, 0)),
                      pl.BlockSpec((kh * kw, ci, co), lambda i: (0, 0, 0))],
            out_specs=(pl.BlockSpec((1, ho * wo, co), lambda i: (i, 0, 0)),
                       pl.BlockSpec((1, 8, co), lambda i: (i, 0, 0))),
            scratch_shapes=[pltpu.VMEM((ho + kh - 1, wo + kw - 1, ci), jnp.float32)]),
        compiler_params=_cparams(),
        cost_estimate=cost,
    )(x, sc, sh, wtaps)


def _finalize_proj(y3, sc3, sh3, ys, scs, shs):
    n, m, c = y3.shape
    return pl.pallas_call(
        _bn_add_relu_kernel,
        out_shape=jax.ShapeDtypeStruct((n, m, c), jnp.float32),
        grid_spec=pltpu.PrefetchScalarGridSpec(
            num_scalar_prefetch=0, grid=(n,),
            in_specs=[pl.BlockSpec((1, m, c), lambda i: (i, 0, 0)),
                      pl.BlockSpec((1, c), lambda i: (0, 0)),
                      pl.BlockSpec((1, c), lambda i: (0, 0)),
                      pl.BlockSpec((1, m, c), lambda i: (i, 0, 0)),
                      pl.BlockSpec((1, c), lambda i: (0, 0)),
                      pl.BlockSpec((1, c), lambda i: (0, 0))],
            out_specs=pl.BlockSpec((1, m, c), lambda i: (i, 0, 0))),
        compiler_params=_cparams(),
    )(y3, sc3, sh3, ys, scs, shs)


def _finalize_identity(y3, sc3, sh3, xs):
    n, m, c = y3.shape
    return pl.pallas_call(
        _bn_addid_relu_kernel,
        out_shape=jax.ShapeDtypeStruct((n, m, c), jnp.float32),
        grid_spec=pltpu.PrefetchScalarGridSpec(
            num_scalar_prefetch=0, grid=(n,),
            in_specs=[pl.BlockSpec((1, m, c), lambda i: (i, 0, 0)),
                      pl.BlockSpec((1, c), lambda i: (0, 0)),
                      pl.BlockSpec((1, c), lambda i: (0, 0)),
                      pl.BlockSpec((1, m, c), lambda i: (i, 0, 0))],
            out_specs=pl.BlockSpec((1, m, c), lambda i: (i, 0, 0))),
        compiler_params=_cparams(),
    )(y3, sc3, sh3, xs)


def _bn_scale_shift(stats, count, gamma_pad, beta_pad):
    """Reduce per-image partial sums -> training-mode BN scale/shift (biased var).
    TODO(synk): E[x^2]-E[x]^2 cancels for large-mean activations; use a Welford
    style two-pass reduce for production accuracy."""
    su = jnp.sum(stats[:, 0, :], axis=0)
    sq = jnp.sum(stats[:, 1, :], axis=0)
    mean = su / float(count)
    var = jnp.maximum(sq / float(count) - mean * mean, 0.0)
    scale = gamma_pad * jax.lax.rsqrt(var + EPS)
    shift = beta_pad - mean * scale
    return scale[None, :], shift[None, :]


# ------------------------------ forward glue -------------------------------

def bottleneck_forward(x_nchw, params, stride):
    N, Cin, H, W = x_nchw.shape
    planes = params['w1'].shape[0]
    expc = 4 * planes
    cin_p = _round_up(Cin, LANE)
    pln_p = _round_up(planes, LANE)
    exp_p = _round_up(expc, LANE)
    assert stride in (1, 2)      # TODO(synk): generalize the space-to-depth rewrite
    if stride == 2:
        assert H % 2 == 0 and W % 2 == 0
    Ho = (H + 2 - 3) // stride + 1
    Wo = (W + 2 - 3) // stride + 1

    # TODO(synk): keep the block's I/O NHWC (and bf16) across layers so these
    # full-tensor transposes / casts disappear in a multi-block network.
    x = jnp.transpose(x_nchw, (0, 2, 3, 1)).astype(jnp.float32)       # NHWC

    # ---- hoisted weight / BN parameter packing (lane-dense, bf16 operands) ----
    w1 = jnp.pad(params['w1'].reshape(planes, Cin).T,
                 ((0, cin_p - Cin), (0, pln_p - planes))).astype(jnp.bfloat16)
    w3 = jnp.pad(params['w3'].reshape(expc, planes).T,
                 ((0, pln_p - planes), (0, exp_p - expc))).astype(jnp.bfloat16)
    g1, b1 = _pad1(params['g1'], pln_p), _pad1(params['b1'], pln_p)
    g2, b2 = _pad1(params['g2'], pln_p), _pad1(params['b2'], pln_p)
    g3, b3 = _pad1(params['g3'], exp_p), _pad1(params['b3'], exp_p)

    w2t = jnp.pad(jnp.transpose(params['w2'], (2, 3, 1, 0)),          # (3,3,I,O)
                  ((0, 0), (0, 0), (0, pln_p - planes), (0, pln_p - planes)))
    if stride == 1:
        w2k = w2t.reshape(9, pln_p, pln_p).astype(jnp.bfloat16)
        kh = kw = 3
    else:
        # stride-2 3x3 conv == 2x2-tap conv over a space-to-depth input; zero
        # taps for the sub-positions the original kernel never touches.
        w2s = jnp.zeros((2, 2, 2, 2, pln_p, pln_p), jnp.float32)
        for ka in range(2):
            for kb in range(2):
                for sr in range(2):
                    for sc_ in range(2):
                        dh, dw = 2 * ka + sr - 1, 2 * kb + sc_ - 1
                        if 0 <= dh < 3 and 0 <= dw < 3:
                            w2s = w2s.at[ka, kb, sr, sc_].set(w2t[dh, dw])
        w2k = w2s.reshape(4, 4 * pln_p, pln_p).astype(jnp.bfloat16)
        kh = kw = 2

    # ---- stage 1: conv1 (1x1) + per-image BN stats; raw output stays bf16 ----
    x1 = _pad_last(x.reshape(N, H * W, Cin), cin_p).astype(jnp.bfloat16)
    y1, st1 = _conv1x1_stats(x1, w1)                                  # (N,H*W,pln_p)
    sc1, sh1 = _bn_scale_shift(st1, N * H * W, g1, b1)

    # ---- stage 2: conv2 (3x3, stride, pad=1) with BN1+ReLU folded into the
    #      load path; the im2col lives entirely in VMEM inside the kernel. ----
    if stride == 1:
        x2 = y1.reshape(N, H, W, pln_p)
        sc2i, sh2i = sc1, sh1
    else:
        # Space-to-depth of the raw conv1 output: one cheap XLA pass over the
        # smallest activation.  TODO(synk): emit this layout from the conv1 kernel.
        x2 = y1.reshape(N, H // 2, 2, W // 2, 2, pln_p)
        x2 = jnp.transpose(x2, (0, 1, 3, 2, 4, 5)).reshape(N, H // 2, W // 2, 4 * pln_p)
        sc2i, sh2i = jnp.tile(sc1, (1, 4)), jnp.tile(sh1, (1, 4))
    y2, st2 = _tap_conv_stats(x2, sc2i, sh2i, w2k, Ho, Wo, kh, kw)    # (N,Ho*Wo,pln_p)
    sc2, sh2 = _bn_scale_shift(st2, N * Ho * Wo, g2, b2)

    # ---- stage 3: conv3 (1x1) with BN2+ReLU folded into its load path ----
    y3, st3 = _act_conv1x1_stats(y2, sc2, sh2, w3)                    # (N,Ho*Wo,exp_p)
    sc3, sh3 = _bn_scale_shift(st3, N * Ho * Wo, g3, b3)

    # ---- shortcut + fused BN3 (+BN_s) + residual add + ReLU ----
    if 'ws' in params:  # projection shortcut (stride != 1 or in_planes != 4*planes)
        ws = jnp.pad(params['ws'].reshape(expc, Cin).T,
                     ((0, cin_p - Cin), (0, exp_p - expc))).astype(jnp.bfloat16)
        gs, bs = _pad1(params['gs'], exp_p), _pad1(params['bs'], exp_p)
        # TODO(synk): fold the strided spatial subsample into the kernel's index_map.
        xs = x[:, ::stride, ::stride, :].reshape(N, Ho * Wo, Cin)
        xs = _pad_last(xs, cin_p).astype(jnp.bfloat16)
        ys, sts = _conv1x1_stats(xs, ws)
        scs, shs = _bn_scale_shift(sts, N * Ho * Wo, gs, bs)
        out = _finalize_proj(y3, sc3, sh3, ys, scs, shs)
    else:               # identity shortcut (f32 residual, no extra rounding)
        xs = _pad_last(x.reshape(N, H * W, Cin), exp_p)
        out = _finalize_identity(y3, sc3, sh3, xs)

    out = out[:, :, :expc].reshape(N, Ho, Wo, expc)
    return jnp.transpose(out, (0, 3, 1, 2))                           # back to NCHW


# --------------------------- pure-JAX reference -----------------------------
# Mirrors the kernels' dtype policy: bf16 MXU operands, f32 accumulation,
# bf16 storage of every intermediate conv output, f32 BN / residual math.

def _conv_nhwc(x, w_torch, stride, padding):
    w = jnp.transpose(w_torch, (2, 3, 1, 0)).astype(jnp.bfloat16)     # OIHW->HWIO
    y = lax.conv_general_dilated(
        x.astype(jnp.bfloat16), w, window_strides=(stride, stride),
        padding=padding, dimension_numbers=('NHWC', 'HWIO', 'NHWC'),
        preferred_element_type=jnp.float32)
    return y.astype(jnp.bfloat16).astype(jnp.float32)  # mirror bf16 intermediate storage


def _bn_train(y, g, b):
    m = jnp.mean(y, axis=(0, 1, 2))
    v = jnp.maximum(jnp.mean(y * y, axis=(0, 1, 2)) - m * m, 0.0)
    scale = g.reshape(-1) * jax.lax.rsqrt(v + EPS)
    shift = b.reshape(-1) - m * scale
    return y * scale + shift


def reference_forward(x_nchw, params, stride):
    x = jnp.transpose(x_nchw, (0, 2, 3, 1)).astype(jnp.float32)
    h1 = jax.nn.relu(_bn_train(_conv_nhwc(x, params['w1'], 1, 'VALID'),
                               params['g1'], params['b1']))
    h2 = jax.nn.relu(_bn_train(_conv_nhwc(h1, params['w2'], stride,
                                          [(1, 1), (1, 1)]),
                               params['g2'], params['b2']))
    o = _bn_train(_conv_nhwc(h2, params['w3'], 1, 'VALID'),
                  params['g3'], params['b3'])
    if 'ws' in params:
        s = _bn_train(_conv_nhwc(x, params['ws'], stride, 'VALID'),
                      params['gs'], params['bs'])
    else:
        s = x
    return jnp.transpose(jax.nn.relu(o + s), (0, 3, 1, 2))


# ---------------------------------- main ------------------------------------

def _make_params(key, in_planes, planes, with_shortcut):
    expc = 4 * planes
    ks = jax.random.split(key, 4)
    p = {
        'w1': 0.1 * jax.random.normal(ks[0], (planes, in_planes, 1, 1), jnp.float32),
        'g1': jnp.ones((planes,), jnp.float32),
        'b1': jnp.zeros((planes,), jnp.float32),
        'w2': 0.1 * jax.random.normal(ks[1], (planes, planes, 3, 3), jnp.float32),
        'g2': jnp.ones((planes,), jnp.float32),
        'b2': jnp.zeros((planes,), jnp.float32),
        'w3': 0.1 * jax.random.normal(ks[2], (expc, planes, 1, 1), jnp.float32),
        'g3': jnp.ones((expc,), jnp.float32),
        'b3': jnp.zeros((expc,), jnp.float32),
    }
    if with_shortcut:
        p['ws'] = 0.1 * jax.random.normal(ks[3], (expc, in_planes, 1, 1), jnp.float32)
        p['gs'] = jnp.ones((expc,), jnp.float32)
        p['bs'] = jnp.zeros((expc,), jnp.float32)
    return p


if __name__ == "__main__":
    key = jax.random.PRNGKey(0)
    k_x1, k_p1, k_x2, k_p2 = jax.random.split(key, 4)

    # Case 1: projection shortcut (stride=2, in_planes != 4*planes)
    N, Cin, H, W, planes, stride = 2, 16, 8, 8, 8, 2
    x = jax.random.normal(k_x1, (N, Cin, H, W), jnp.float32)
    params = _make_params(k_p1, Cin, planes, with_shortcut=True)
    out = jax.block_until_ready(bottleneck_forward(x, params, stride))
    ref = jax.block_until_ready(reference_forward(x, params, stride))
    Ho = (H + 2 - 3) // stride + 1
    assert out.shape == (N, 4 * planes, Ho, Ho), out.shape
    np.testing.assert_allclose(np.asarray(out), np.asarray(ref),
                               rtol=5e-3, atol=5e-3)

    # Case 2: identity shortcut (stride=1, in_planes == 4*planes)
    planes2, stride2 = 8, 1
    Cin2 = 4 * planes2
    x2 = jax.random.normal(k_x2, (N, Cin2, H, W), jnp.float32)
    params2 = _make_params(k_p2, Cin2, planes2, with_shortcut=False)
    out2 = jax.block_until_ready(bottleneck_forward(x2, params2, stride2))
    ref2 = jax.block_until_ready(reference_forward(x2, params2, stride2))
    assert out2.shape == (N, 4 * planes2, H, W), out2.shape
    np.testing.assert_allclose(np.asarray(out2), np.asarray(ref2),
                               rtol=5e-3, atol=5e-3)

    print("KERNEL_OK")
</pallas_src>

<mosaic_0001>
module attributes {stable_mosaic.version = 11 : i64} {
  func.func @_conv1x1_stats_kernel(%arg0: i32, %arg1: memref<1x64x128xbf16, #tpu.memory_space<vmem>>, %arg2: memref<128x128xbf16, #tpu.memory_space<vmem>>, %arg3: memref<1x64x128xbf16, #tpu.memory_space<vmem>>, %arg4: memref<1x8x128xf32, #tpu.memory_space<vmem>>) attributes {dimension_semantics = [#tpu.dimension_semantics<parallel>], iteration_bounds = array<i64: 2>, scalar_prefetch = 0 : i64, scratch_operands = 0 : i64, tpu.core_type = #tpu.core_type<tc>, window_params = [{transform_indices = @transform_0, window_bounds = array<i64: 1, 64, 128>}, {pipeline_mode = #tpu.pipeline_mode<synchronous>, transform_indices = @transform_1, window_bounds = array<i64: 128, 128>}, {transform_indices = @transform_2, window_bounds = array<i64: 1, 64, 128>}, {transform_indices = @transform_3, window_bounds = array<i64: 1, 8, 128>}]} {
    %c0 = arith.constant 0 : index
    %c0_0 = arith.constant 0 : index
    %c0_1 = arith.constant 0 : index
    %0 = vector.load %arg1[%c0, %c0_0, %c0_1] : memref<1x64x128xbf16, #tpu.memory_space<vmem>>, vector<1x64x128xbf16>
    %1 = vector.shape_cast %0 : vector<1x64x128xbf16> to vector<64x128xbf16>
    %c0_2 = arith.constant 0 : index
    %c0_3 = arith.constant 0 : index
    %2 = vector.load %arg2[%c0_2, %c0_3] : memref<128x128xbf16, #tpu.memory_space<vmem>>, vector<128x128xbf16>
    %cst = arith.constant dense<0.000000e+00> : vector<64x128xf32>
    %3 = tpu.matmul %1, %2, %cst {dimension_numbers = #tpu.dot_dimension_numbers<[1], [0], [0], [1], [0, 0, 1, 1], [], []>} : vector<64x128xbf16>, vector<128x128xbf16>, vector<64x128xf32> -> vector<64x128xf32>
    %4 = arith.truncf %3 : vector<64x128xf32> to vector<64x128xbf16>
    %c0_4 = arith.constant 0 : index
    %c0_5 = arith.constant 0 : index
    %c0_6 = arith.constant 0 : index
    %5 = vector.load %arg3[%c0_4, %c0_5, %c0_6] : memref<1x64x128xbf16, #tpu.memory_space<vmem>>, vector<1x64x128xbf16>
    %6 = vector.shape_cast %5 : vector<1x64x128xbf16> to vector<64x128xbf16>
    %7 = vector.shape_cast %4 : vector<64x128xbf16> to vector<1x64x128xbf16>
    tpu.vector_store %arg3[%c0_4, %c0_5, %c0_6], %7 {strides = array<i32>} : memref<1x64x128xbf16, #tpu.memory_space<vmem>>, vector<1x64x128xbf16>,
    %8 = arith.extf %4 : vector<64x128xbf16> to vector<64x128xf32>
    %cst_7 = arith.constant dense<0.000000e+00> : vector<128xf32>
    %9 = vector.multi_reduction <add>, %8, %cst_7 [0] : vector<64x128xf32> to vector<128xf32>
    %10 = vector.shape_cast %9 : vector<128xf32> to vector<1x128xf32>
    %11 = arith.mulf %8, %8 : vector<64x128xf32>
    %cst_8 = arith.constant dense<0.000000e+00> : vector<128xf32>
    %12 = vector.multi_reduction <add>, %11, %cst_8 [0] : vector<64x128xf32> to vector<128xf32>
    %13 = vector.shape_cast %12 : vector<128xf32> to vector<1x128xf32>
    %cst_9 = arith.constant 0.000000e+00 : f32
    %14 = vector.broadcast %cst_9 : f32 to vector<6x128xf32>
    %15 = tpu.concatenate %10, %13, %14 in 0 : vector<1x128xf32>, vector<1x128xf32>, vector<6x128xf32> -> vector<8x128xf32>
    %c0_10 = arith.constant 0 : index
    %c0_11 = arith.constant 0 : index
    %c0_12 = arith.constant 0 : index
    %16 = vector.load %arg4[%c0_10, %c0_11, %c0_12] : memref<1x8x128xf32, #tpu.memory_space<vmem>>, vector<1x8x128xf32>
    %17 = vector.shape_cast %16 : vector<1x8x128xf32> to vector<8x128xf32>
    %18 = vector.shape_cast %15 : vector<8x128xf32> to vector<1x8x128xf32>
    tpu.vector_store %arg4[%c0_10, %c0_11, %c0_12], %18 {strides = array<i32>} : memref<1x8x128xf32, #tpu.memory_space<vmem>>, vector<1x8x128xf32>,
    return
  }
  func.func @transform_0(%arg0: i32) -> (i32, i32, i32) {
    %c0_i32 = arith.constant 0 : i32
    %c0_i32_0 = arith.constant 0 : i32
    %c0_i32_1 = arith.constant 0 : i32
    return %arg0, %c0_i32, %c0_i32_0 : i32, i32, i32
  }
  func.func @transform_1(%arg0: i32) -> (i32, i32) {
    %c0_i32 = arith.constant 0 : i32
    %c0_i32_0 = arith.constant 0 : i32
    %c0_i32_1 = arith.constant 0 : i32
    return %c0_i32, %c0_i32_0 : i32, i32
  }
  func.func @transform_2(%arg0: i32) -> (i32, i32, i32) {
    %c0_i32 = arith.constant 0 : i32
    %c0_i32_0 = arith.constant 0 : i32
    %c0_i32_1 = arith.constant 0 : i32
    return %arg0, %c0_i32, %c0_i32_0 : i32, i32, i32
  }
  func.func @transform_3(%arg0: i32) -> (i32, i32, i32) {
    %c0_i32 = arith.constant 0 : i32
    %c0_i32_0 = arith.constant 0 : i32
    %c0_i32_1 = arith.constant 0 : i32
    return %arg0, %c0_i32, %c0_i32_0 : i32, i32, i32
  }
}

</mosaic_0001>

<llo_original>
// kernel: tpu_custom_call.1
$region0: #{tpu_custom_call.1}
  #allocation0 [shape = 'u32[]', space=smem, size = 0x4, offset = 0x4, fixed_abs, tag = 'smem constant byte address 0x4 - core index']
  #allocation1 [shape = 'u32[144,128]{1,0:T(1,128)}', space=vmem, size = 0x12000, scoped, tag = 'internal scratch']
  %s0 = inlined_call_operand.hbm [shape: bf16[2,64,128], index: 0, kind: input, shape index: {}]
  %s1 = inlined_call_operand.hbm [shape: bf16[128,128], index: 1, kind: input, shape index: {}]
  %s2 = inlined_call_operand.hbm [shape: bf16[2,64,128], index: 2, kind: output, shape index: {0}]
  %s3 = inlined_call_operand.hbm [shape: f32[2,8,128], index: 3, kind: output, shape index: {1}]
  %4 = xla_tuple %s2, %s3
  %s5 = sld [smem:[#allocation0]]
  $region57: #{tpu_custom_call.1} parent=0
    _
  %s7 = ssub.s32 1, %s5
  %s8 = scalar_select 0, %s7, %s5
  $region1: #{tpu_custom_call.1} parent=0
    #allocation2 [shape = 'u8[32768]{0}', space=vmem, size = 0x8000, scoped, tag = 'input window, operand 0']
    #allocation3 [shape = 's32[2]{0}', space=sflag, size = 0x8, scoped, tag = 'scoped memory for tpu_custom_call.1']
    #allocation4 [shape = 's32[2]{0}', space=sflag, size = 0x8, scoped, tag = 'scoped memory for tpu_custom_call.1']
    #allocation5 [shape = 'u8[32768]{0}', space=vmem, size = 0x8000, scoped, tag = 'input window, operand 1, single buffered']
    #allocation6 [shape = 's32[1]{0}', space=sflag, size = 0x4, scoped, tag = 'scoped memory for tpu_custom_call.1']
    #allocation7 [shape = 'u8[32768]{0}', space=vmem, size = 0x8000, scoped, tag = 'output window, operand 0']
    #allocation8 [shape = 'u8[8192]{0}', space=vmem, size = 0x2000, scoped, tag = 'output window, operand 1']
    #allocation9 [shape = 's32[2]{0}', space=sflag, size = 0x8, scoped, tag = 'scoped memory for tpu_custom_call.1']
    %9 = vsyncpa [#allocation3], 0
    %s10 = scalar_lea.sflag [#allocation3], 1
    %11 = vsyncpa %s10, 0
    %12 = vsyncpa [#allocation6], 0
    %13 = vsyncpa [#allocation4], 0
    %s14 = scalar_lea.sflag [#allocation4], 1
    %15 = vsyncpa %s14, 0
    %16 = vsyncpa [#allocation9], 0
    %s17 = scalar_lea.sflag [#allocation9], 1
    %18 = vsyncpa %s17, 0
    loop: start=0, step=1, limit=4
    $region2: #{tpu_custom_call.1} parent=1 // loop_pre_header
      _
    $region3: #{tpu_custom_call.1} parent=1 // loop_header
      %s20 = sphi 0, %s24
      %p21 = scmp.ge.s32.totalorder %s20, 4
      %s30 = sphi 0, %s32
      %s33 = sphi 0, %s30
      %s34 = sphi 0, %s33
      %s50 = sphi 0, %s34
      %s54 = sphi 0, %s54
      %s56 = sphi 0, %s54
      %s57 = sphi 0, %s56
      %s71 = sphi 0, %s57
      %s77 = sphi 0, %s79
      %s80 = sphi 0, %s77
      %s81 = sphi 0, %s80
      %s97 = sphi 0, %s81
      %s103 = sphi 0, %s105
      %s106 = sphi 0, %s103
      %s107 = sphi 0, %s106
      %s123 = sphi 0, %s107
    $region4: #{tpu_custom_call.1} parent=1 // loop_header_branch
      %23 = sbr.rel (%p21) target = $region8
    $region5: #{tpu_custom_call.1} parent=1 // loop_body
      %s25 = ssub.s32 %s20, 1
      %s26 = ssub.s32 %s20, 2
      %s27 = sadd.s32 %s20, 1
      %s28 = ssub.s32 %s20, %s27
      %p29 = scmp.eq.s32.totalorder %s28, 0
      %s31 = sadd.s32 %s30, 1
      %s32 = scalar_select %p29, %s30, %s31
      %p35 = pneg %p29
      %p36 = scmp.eq.s32.totalorder %s20, 1
      %p37 = por %p35, %p36
      %p38 = scmp.ne.s32.totalorder %s30, %s33
      %p39 = scmp.eq.s32.totalorder %s20, 0
      %p40 = por %p38, %p39
      %p41 = scmp.ne.s32.totalorder %s30, %s33
      %p42 = scmp.eq.s32.totalorder %s25, 1
      %p43 = por %p41, %p42
      %p44 = scmp.ne.s32.totalorder %s33, %s34
      %p45 = scmp.eq.s32.totalorder %s25, 0
      %p46 = por %p44, %p45
      %p47 = scmp.ne.s32.totalorder %s33, %s34
      %p48 = scmp.eq.s32.totalorder %s26, 1
      %p49 = por %p47, %p48
      %p51 = scmp.ne.s32.totalorder %s34, %s50
      %p52 = scmp.eq.s32.totalorder %s26, 0
      %p53 = por %p51, %p52
      %s55 = sadd.s32 %s54, 1
      %p58 = scmp.eq.s32.totalorder %s20, 1
      %p59 = scmp.ne.s32.totalorder %s54, %s56
      %p60 = scmp.eq.s32.totalorder %s20, 0
      %p61 = por %p59, %p60
      %p62 = scmp.ne.s32.totalorder %s54, %s56
      %p63 = scmp.eq.s32.totalorder %s25, 1
      %p64 = por %p62, %p63
      %p65 = scmp.ne.s32.totalorder %s56, %s57
      %p66 = scmp.eq.s32.totalorder %s25, 0
      %p67 = por %p65, %p66
      %p68 = scmp.ne.s32.totalorder %s56, %s57
      %p69 = scmp.eq.s32.totalorder %s26, 1
      %p70 = por %p68, %p69
      %p72 = scmp.ne.s32.totalorder %s57, %s71
      %p73 = scmp.eq.s32.totalorder %s26, 0
      %p74 = por %p72, %p73
      %s75 = ssub.s32 %s20, %s27
      %p76 = scmp.eq.s32.totalorder %s75, 0
      %s78 = sadd.s32 %s77, 1
      %s79 = scalar_select %p76, %s77, %s78
      %p82 = pneg %p76
      %p83 = scmp.eq.s32.totalorder %s20, 1
      %p84 = por %p82, %p83
      %p85 = scmp.ne.s32.totalorder %s77, %s80
      %p86 = scmp.eq.s32.totalorder %s20, 0
      %p87 = por %p85, %p86
      %p88 = scmp.ne.s32.totalorder %s77, %s80
      %p89 = scmp.eq.s32.totalorder %s25, 1
      %p90 = por %p88, %p89
      %p91 = scmp.ne.s32.totalorder %s80, %s81
      %p92 = scmp.eq.s32.totalorder %s25, 0
      %p93 = por %p91, %p92
      %p94 = scmp.ne.s32.totalorder %s80, %s81
      %p95 = scmp.eq.s32.totalorder %s26, 1
      %p96 = por %p94, %p95
      %p98 = scmp.ne.s32.totalorder %s81, %s97
      %p99 = scmp.eq.s32.totalorder %s26, 0
      %p100 = por %p98, %p99
      %s101 = ssub.s32 %s20, %s27
      %p102 = scmp.eq.s32.totalorder %s101, 0
      %s104 = sadd.s32 %s103, 1
      %s105 = scalar_select %p102, %s103, %s104
      %p108 = pneg %p102
      %p109 = scmp.eq.s32.totalorder %s20, 1
      %p110 = por %p108, %p109
      %p111 = scmp.ne.s32.totalorder %s103, %s106
      %p112 = scmp.eq.s32.totalorder %s20, 0
      %p113 = por %p111, %p112
      %p114 = scmp.ne.s32.totalorder %s103, %s106
      %p115 = scmp.eq.s32.totalorder %s25, 1
      %p116 = por %p114, %p115
      %p117 = scmp.ne.s32.totalorder %s106, %s107
      %p118 = scmp.eq.s32.totalorder %s25, 0
      %p119 = por %p117, %p118
      %p120 = scmp.ne.s32.totalorder %s106, %s107
      %p121 = scmp.eq.s32.totalorder %s26, 1
      %p122 = por %p120, %p121
      %p124 = scmp.ne.s32.totalorder %s107, %s123
      %p125 = scmp.eq.s32.totalorder %s26, 0
      %p126 = por %p124, %p125
      %p127 = scmp.le.s32.totalorder 1, %s20
      %p128 = scmp.lt.s32.totalorder %s20, 3
      %p129 = pnand %p127, %p128
      %p130 = pneg %p129
      // Predicated region
      $region9: #{tpu_custom_call.1} parent=5 // pred_check
        _
      $region10: #{tpu_custom_call.1} parent=5 // pred_check_branch
        %132 = sbr.rel (%p129) target = $region12
      $region11: #{tpu_custom_call.1} parent=5 // pred_region
        %s133 = ssub.s32 %s20, 1
        // Predicated region
        $region13: #{tpu_custom_call.1} parent=11 // pred_check
          %p134 = pneg %p67
        $region14: #{tpu_custom_call.1} parent=11 // pred_check_branch
          %136 = sbr.rel (%p134) target = $region16
        $region15: #{tpu_custom_call.1} parent=11 // pred_region
          %s138 = ssub.s32 1024, 1024
          %139 = vsyncadd [#allocation6], %s138
          %s140 = sshll.u32 [#allocation5], 4
          %s141 = int_to_ptr.vmem [resolvable:$true] %s140
          %146 = dma.hbm_to_vmem [thread:$0]  %s1, 1024, %s141, [#allocation6], 64, 64, 4
        $region16: #{tpu_custom_call.1} parent=11 // pred_fallthru
          _
      $region12: #{tpu_custom_call.1} parent=5 // pred_fallthru
        _
      %p147 = scmp.lt.s32.totalorder %s20, 2
      // Predicated region
      $region17: #{tpu_custom_call.1} parent=5 // pred_check
        %p148 = pneg %p147
      $region18: #{tpu_custom_call.1} parent=5 // pred_check_branch
        %150 = sbr.rel (%p148) target = $region20
      $region19: #{tpu_custom_call.1} parent=5 // pred_region
        // Predicated region
        $region21: #{tpu_custom_call.1} parent=19 // pred_check
          %p151 = pneg %p40
        $region22: #{tpu_custom_call.1} parent=19 // pred_check_branch
          %153 = sbr.rel (%p151) target = $region24
        $region23: #{tpu_custom_call.1} parent=19 // pred_region
          %s154 = sand.u32 %s30, 1
          %s155 = scalar_lea.sflag [#allocation3], %s154
          %s156 = sand.u32 %s30, 1
          %s157 = smul.addr %s156, 32
          %s158 = scalar_lea.vmem [#allocation2], %s157
          %s160 = ssub.s32 512, 512
          %161 = vsyncadd %s155, %s160
          %s162 = smul.addr %s20, 8
          %s163 = smul.addr %s162, 64
          %s164 = scalar_lea.hbm %s0, %s163
          %s165 = sshll.u32 %s158, 4
          %s166 = int_to_ptr.vmem [resolvable:$true] %s165
          %171 = dma.hbm_to_vmem [thread:$0]  %s164, 512, %s166, %s155, 64, 64, 4
        $region24: #{tpu_custom_call.1} parent=19 // pred_fallthru
          _
      $region20: #{tpu_custom_call.1} parent=5 // pred_fallthru
        _
      %p172 = scmp.le.s32.totalorder 1, %s20
      %p173 = scmp.lt.s32.totalorder %s20, 3
      %p174 = pnand %p172, %p173
      %p175 = pneg %p174
      // Predicated region
      $region25: #{tpu_custom_call.1} parent=5 // pred_check
        _
      $region26: #{tpu_custom_call.1} parent=5 // pred_check_branch
        %177 = sbr.rel (%p174) target = $region28
      $region27: #{tpu_custom_call.1} parent=5 // pred_region
        %s178 = ssub.s32 %s20, 1
        %s179 = sand.u32 %s33, 1
        %s180 = scalar_lea.sflag [#allocation3], %s179
        %s181 = sand.u32 %s33, 1
        %s182 = smul.addr %s181, 32
        %s183 = scalar_lea.vmem [#allocation2], %s182
        // Predicated region
        $region29: #{tpu_custom_call.1} parent=27 // pred_check
          %p184 = pneg %p46
        $region30: #{tpu_custom_call.1} parent=27 // pred_check_branch
          %186 = sbr.rel (%p184) target = $region32
        $region31: #{tpu_custom_call.1} parent=27 // pred_region
          %187 = dma.done %s180, 512
        $region32: #{tpu_custom_call.1} parent=27 // pred_fallthru
          _
        // Predicated region
        $region33: #{tpu_custom_call.1} parent=27 // pred_check
          %p188 = pneg %p67
        $region34: #{tpu_custom_call.1} parent=27 // pred_check_branch
          %190 = sbr.rel (%p188) target = $region36
        $region35: #{tpu_custom_call.1} parent=27 // pred_region
          %191 = dma.done [#allocation6], 1024
        $region36: #{tpu_custom_call.1} parent=27 // pred_fallthru
          _
        %s192 = sand.u32 %s33, 1
        %s193 = scalar_lea.sflag [#allocation3], %s192
        %s194 = sand.u32 %s33, 1
        %s195 = smul.addr %s194, 32
        %s196 = scalar_lea.vmem [#allocation2], %s195
        %p197 = pneg %p46
        %p198 = pneg %p43
        %p199 = pneg %p67
        %p200 = pneg %p64
        %p201 = pneg %p93
        %p202 = pneg %p90
        %s203 = sand.u32 %s80, 1
        %s204 = scalar_lea.sflag [#allocation4], %s203
        %s205 = sand.u32 %s80, 1
        %s206 = smul.addr %s205, 32
        %s207 = scalar_lea.vmem [#allocation7], %s206
        %p208 = pneg %p119
        %p209 = pneg %p116
        %s210 = sand.u32 %s106, 1
        %s211 = scalar_lea.sflag [#allocation9], %s210
        %s212 = sand.u32 %s106, 1
        %s213 = smul.addr %s212, 8
        %s214 = scalar_lea.vmem [#allocation8], %s213
        %v216 = vld [vmem:[%s183] sm:$0xf]
        %v217 = vld [vmem:[%s183 + $0x4] sm:$0xf]
        %v218 = vld [vmem:[%s183 + $0x8] sm:$0xf]
        %v219 = vld [vmem:[%s183 + $0xc] sm:$0xf]
        %v220 = vld [vmem:[%s183 + $0x10] sm:$0xf]
        %v221 = vld [vmem:[%s183 + $0x14] sm:$0xf]
        %v222 = vld [vmem:[%s183 + $0x18] sm:$0xf]
        %v223 = vld [vmem:[%s183 + $0x1c] sm:$0xf]
        %v224 = vld [vmem:[#allocation5] sm:$0xf]
        %v225 = vld [vmem:[#allocation5 + $0x4] sm:$0xf]
        %v226 = vld [vmem:[#allocation5 + $0x8] sm:$0xf]
        %v227 = vld [vmem:[#allocation5 + $0xc] sm:$0xf]
        %v228 = vld [vmem:[#allocation5 + $0x10] sm:$0xf]
        %v229 = vld [vmem:[#allocation5 + $0x14] sm:$0xf]
        %v230 = vld [vmem:[#allocation5 + $0x18] sm:$0xf]
        %v231 = vld [vmem:[#allocation5 + $0x1c] sm:$0xf]
        %v232 = vld [vmem:[#allocation5 + $0x20] sm:$0xf]
        %v233 = vld [vmem:[#allocation5 + $0x24] sm:$0xf]
        %v234 = vld [vmem:[#allocation5 + $0x28] sm:$0xf]
        %v235 = vld [vmem:[#allocation5 + $0x2c] sm:$0xf]
        %v236 = vld [vmem:[#allocation5 + $0x30] sm:$0xf]
        %v237 = vld [vmem:[#allocation5 + $0x34] sm:$0xf]
        %v238 = vld [vmem:[#allocation5 + $0x38] sm:$0xf]
        %v239 = vld [vmem:[#allocation5 + $0x3c] sm:$0xf]
        %v248 = vunpack.c.l.b16 %v216
        %v249 = vunpack.c.l.b16 %v217
        %v250 = vunpack.c.l.b16 %v218
        %v251 = vunpack.c.l.b16 %v219
        %v252 = vunpack.c.l.b16 %v220
        %v253 = vunpack.c.l.b16 %v221
        %v254 = vunpack.c.l.b16 %v222
        %v255 = vunpack.c.l.b16 %v223
        %v256 = vpack.c.b16 %v249, %v248
        %v257 = vpack.c.b16 %v251, %v250
        %v258 = vpack.c.b16 %v253, %v252
        %v259 = vpack.c.b16 %v255, %v254
        %v280 = vunpack.c.l.b16 %v224
        %v281 = vunpack.c.l.b16 %v225
        %v282 = vunpack.c.l.b16 %v226
        %v283 = vunpack.c.l.b16 %v227
        %v284 = vunpack.c.l.b16 %v228
        %v285 = vunpack.c.l.b16 %v229
        %v286 = vunpack.c.l.b16 %v230
        %v287 = vunpack.c.l.b16 %v231
        %v288 = vunpack.c.l.b16 %v232
        %v289 = vunpack.c.l.b16 %v233
        %v290 = vunpack.c.l.b16 %v234
        %v291 = vunpack.c.l.b16 %v235
        %v292 = vunpack.c.l.b16 %v236
        %v293 = vunpack.c.l.b16 %v237
        %v294 = vunpack.c.l.b16 %v238
        %v295 = vunpack.c.l.b16 %v239
        %v296 = vpack.c.b16 %v281, %v280
        %v297 = vpack.c.b16 %v283, %v282
        %v298 = vpack.c.b16 %v285, %v284
        %v299 = vpack.c.b16 %v287, %v286
        %v300 = vpack.c.b16 %v289, %v288
        %v301 = vpack.c.b16 %v291, %v290
        %v302 = vpack.c.b16 %v293, %v292
        %v303 = vpack.c.b16 %v295, %v294
        %312 = vmatprep.subr.bf16.mxu0 0
        %313 = vmatpush1.bf16.msra.mxu0 %v296
        %314 = vmatprep.subr.bf16.mxu0 0
        %315 = vmatpush1.bf16.msra.mxu0 %v297
        %316 = vmatprep.subr.bf16.mxu0 0
        %317 = vmatpush1.bf16.msra.mxu0 %v298
        %318 = vmatprep.subr.bf16.mxu0 0
        %319 = vmatpush1.bf16.msra.mxu0 %v299
        %320 = vmatprep.subr.bf16.mxu0 0
        %321 = vmatpush1.bf16.msra.mxu0 %v300
        %322 = vmatprep.subr.bf16.mxu0 0
        %323 = vmatpush1.bf16.msra.mxu0 %v301
        %324 = vmatprep.subr.bf16.mxu0 0
        %325 = vmatpush1.bf16.msra.mxu0 %v302
        %326 = vmatprep.subr.bf16.mxu0 0
        %327 = vmatpush1.bf16.msra.mxu0 %v303
        %328 = vmatprep.subr.bf16.mxu0 0
        %329 = vmatpush1.bf16.msra.mxu0 0
        %330 = vmatprep.subr.bf16.mxu0 0
        %331 = vmatpush1.bf16.msra.mxu0 0
        %332 = vmatprep.subr.bf16.mxu0 0
        %333 = vmatpush1.bf16.msra.mxu0 0
        %334 = vmatprep.subr.bf16.mxu0 0
        %335 = vmatpush1.bf16.msra.mxu0 0
        %336 = vmatprep.subr.bf16.mxu0 0
        %337 = vmatpush1.bf16.msra.mxu0 0
        %338 = vmatprep.subr.bf16.mxu0 0
        %339 = vmatpush1.bf16.msra.mxu0 0
        %340 = vmatprep.subr.bf16.mxu0 0
        %341 = vmatpush1.bf16.msra.mxu0 0
        %342 = vmatprep.subr.bf16.mxu0 0
        %343 = vmatpush1.bf16.msra.mxu0 0
        %344 = vmatprep.mubr.bf16.mxu0 0
        %345 = vmatmul.mubr.bf16.gmra.mrb[0].mxu0 %v256
        %v346 = vpop.f32.mrb[0].mxu0
        %v347 = vadd.f32 0.0, %v346
        %v348 = vpop.f32.mrb[0].mxu0
        %v349 = vpop.f32.mrb[0].mxu0
        %v350 = vadd.f32 0.0, %v349
        %v351 = vpop.f32.mrb[0].mxu0
        %352 = vmatprep.mubr.bf16.mxu0 0
        %353 = vmatmul.mubr.bf16.gmra.mrb[0].mxu0 %v257
        %v354 = vpop.f32.mrb[0].mxu0
        %v355 = vadd.f32 0.0, %v354
        %v356 = vpop.f32.mrb[0].mxu0
        %v357 = vpop.f32.mrb[0].mxu0
        %v358 = vadd.f32 0.0, %v357
        %v359 = vpop.f32.mrb[0].mxu0
        %360 = vmatprep.mubr.bf16.mxu0 0
        %361 = vmatmul.mubr.bf16.gmra.mrb[0].mxu0 %v258
        %v362 = vpop.f32.mrb[0].mxu0
        %v363 = vadd.f32 0.0, %v362
        %v364 = vpop.f32.mrb[0].mxu0
        %v365 = vpop.f32.mrb[0].mxu0
        %v366 = vadd.f32 0.0, %v365
        %v367 = vpop.f32.mrb[0].mxu0
        %368 = vmatprep.mubr.bf16.mxu0 0
        %369 = vmatmul.mubr.bf16.gmra.mrb[0].mxu0 %v259
        %v370 = vpop.f32.mrb[0].mxu0
        %v371 = vadd.f32 0.0, %v370
        %v372 = vpop.f32.mrb[0].mxu0
        %v373 = vpop.f32.mrb[0].mxu0
        %v374 = vadd.f32 0.0, %v373
        %v375 = vpop.f32.mrb[0].mxu0
        %376 = vdwg.mxu0
        %v377 = vpack.c.bf16 %v350, %v347
        %v378 = vpack.c.bf16 %v358, %v355
        %v379 = vpack.c.bf16 %v366, %v363
        %v380 = vpack.c.bf16 %v374, %v371
        %v385 = vunpack.c.l.b16 %v377
        %v386 = vunpack.c.h.b16 %v377
        %v387 = vunpack.c.l.b16 %v378
        %v388 = vunpack.c.h.b16 %v378
        %v389 = vunpack.c.l.b16 %v379
        %v390 = vunpack.c.h.b16 %v379
        %v391 = vunpack.c.l.b16 %v380
        %v392 = vunpack.c.h.b16 %v380
        %v393 = vpack.c.b16 %v385, %v385
        %v394 = vpack.c.b16 %v386, %v386
        %v395 = vpack.c.b16 %v387, %v387
        %v396 = vpack.c.b16 %v388, %v388
        %v397 = vpack.c.b16 %v389, %v389
        %v398 = vpack.c.b16 %v390, %v390
        %v399 = vpack.c.b16 %v391, %v391
        %v400 = vpack.c.b16 %v392, %v392
        %409 = vst [vmem:[%s207] sm:$0xf] %v393
        %410 = vst [vmem:[%s207 + $0x4] sm:$0xf] %v394
        %411 = vst [vmem:[%s207 + $0x8] sm:$0xf] %v395
        %412 = vst [vmem:[%s207 + $0xc] sm:$0xf] %v396
        %413 = vst [vmem:[%s207 + $0x10] sm:$0xf] %v397
        %414 = vst [vmem:[%s207 + $0x14] sm:$0xf] %v398
        %415 = vst [vmem:[%s207 + $0x18] sm:$0xf] %v399
        %416 = vst [vmem:[%s207 + $0x1c] sm:$0xf] %v400
        %v417 = vunpack.c.l.bf16 %v377
        %v418 = vunpack.c.h.bf16 %v377
        %v419 = vunpack.c.l.bf16 %v378
        %v420 = vunpack.c.h.bf16 %v378
        %v421 = vunpack.c.l.bf16 %v379
        %v422 = vunpack.c.h.bf16 %v379
        %v423 = vunpack.c.l.bf16 %v380
        %v424 = vunpack.c.h.bf16 %v380
        %v425 = vadd.f32 %v417, %v418
        %v426 = vadd.f32 %v425, %v419
        %v427 = vadd.f32 %v426, %v420
        %v428 = vadd.f32 %v427, %v421
        %v429 = vadd.f32 %v428, %v422
        %v430 = vadd.f32 %v429, %v423
        %v431 = vadd.f32 %v430, %v424
        %v432 = vrot.slane %v431, 4
        %v433 = vadd.f32 %v431, %v432
        %v434 = vrot.slane %v433, 2
        %v435 = vadd.f32 %v433, %v434
        %v436 = vrot.slane %v435, 1
        %v437 = vadd.f32 %v435, %v436
        %v438 = vmul.f32 %v417, %v417
        %v439 = vmul.f32 %v418, %v418
        %v440 = vmul.f32 %v419, %v419
        %v441 = vmul.f32 %v420, %v420
        %v442 = vmul.f32 %v421, %v421
        %v443 = vmul.f32 %v422, %v422
        %v444 = vmul.f32 %v423, %v423
        %v445 = vmul.f32 %v424, %v424
        %v446 = vadd.f32 %v438, %v439
        %v447 = vadd.f32 %v446, %v440
        %v448 = vadd.f32 %v447, %v441
        %v449 = vadd.f32 %v448, %v442
        %v450 = vadd.f32 %v449, %v443
        %v451 = vadd.f32 %v450, %v444
        %v452 = vadd.f32 %v451, %v445
        %v453 = vrot.slane %v452, 4
        %v454 = vadd.f32 %v452, %v453
        %v455 = vrot.slane %v454, 2
        %v456 = vadd.f32 %v454, %v455
        %v457 = vrot.slane %v456, 1
        %v458 = vadd.f32 %v456, %v457
        %vm459 = vcmask 1040384
        %v460 = vsel %vm459, %v437, %v458
        %vm461 = vcmask 1041408
        %v462 = vsel %vm461, %v460, 0.0
        %463 = vst [vmem:[%s214] sm:$0xff] %v462
        %s464 = sand.u32 %s80, 1
        %s465 = scalar_lea.sflag [#allocation4], %s464
        %s466 = sand.u32 %s80, 1
        %s467 = smul.addr %s466, 32
        %s468 = scalar_lea.vmem [#allocation7], %s467
        %s469 = sand.u32 %s106, 1
        %s470 = scalar_lea.sflag [#allocation9], %s469
        %s471 = sand.u32 %s106, 1
        %s472 = smul.addr %s471, 8
        %s473 = scalar_lea.vmem [#allocation8], %s472
        // Predicated region
        $region37: #{tpu_custom_call.1} parent=27 // pred_check
          %p474 = pneg %p90
        $region38: #{tpu_custom_call.1} parent=27 // pred_check_branch
          %476 = sbr.rel (%p474) target = $region40
        $region39: #{tpu_custom_call.1} parent=27 // pred_region
          %s478 = ssub.s32 512, 512
          %479 = vsyncadd %s465, %s478
          %s480 = smul.addr %s25, 8
          %s481 = smul.addr %s480, 64
          %s482 = scalar_lea.hbm %s2, %s481
          %s483 = sshll.u32 %s468, 4
          %s484 = int_to_ptr.vmem [resolvable:$true] %s483
          %489 = dma.vmem_to_hbm [thread:$0]  %s484, 512, %s482, %s465, 64, 64, 4
        $region40: #{tpu_custom_call.1} parent=27 // pred_fallthru
          _
        // Predicated region
        $region41: #{tpu_custom_call.1} parent=27 // pred_check
          %p490 = pneg %p116
        $region42: #{tpu_custom_call.1} parent=27 // pred_check_branch
          %492 = sbr.rel (%p490) target = $region44
        $region43: #{tpu_custom_call.1} parent=27 // pred_region
          %s494 = ssub.s32 128, 128
          %495 = vsyncadd %s470, %s494
          %s496 = smul.addr %s25, 128
          %s497 = scalar_lea.hbm %s3, %s496
          %s499 = sshll.u32 %s473, 4
          %s500 = int_to_ptr.vmem [resolvable:$true] %s499
          %502 = dma.vmem_to_hbm [thread:$0]  %s500, 128, %s497, %s470
        $region44: #{tpu_custom_call.1} parent=27 // pred_fallthru
          _
      $region28: #{tpu_custom_call.1} parent=5 // pred_fallthru
        _
      %p503 = scmp.le.s32.totalorder 2, %s20
      // Predicated region
      $region45: #{tpu_custom_call.1} parent=5 // pred_check
        %p504 = pneg %p503
      $region46: #{tpu_custom_call.1} parent=5 // pred_check_branch
        %506 = sbr.rel (%p504) target = $region48
      $region47: #{tpu_custom_call.1} parent=5 // pred_region
        %s507 = ssub.s32 %s20, 2
        // Predicated region
        $region49: #{tpu_custom_call.1} parent=47 // pred_check
          %p508 = pneg %p96
        $region50: #{tpu_custom_call.1} parent=47 // pred_check_branch
          %510 = sbr.rel (%p508) target = $region52
        $region51: #{tpu_custom_call.1} parent=47 // pred_region
          %s511 = sand.u32 %s81, 1
          %s512 = scalar_lea.sflag [#allocation4], %s511
          %s513 = sand.u32 %s81, 1
          %s514 = smul.addr %s513, 32
          %s515 = scalar_lea.vmem [#allocation7], %s514
          %516 = dma.done %s512, 512
        $region52: #{tpu_custom_call.1} parent=47 // pred_fallthru
          _
        // Predicated region
        $region53: #{tpu_custom_call.1} parent=47 // pred_check
          %p517 = pneg %p122
        $region54: #{tpu_custom_call.1} parent=47 // pred_check_branch
          %519 = sbr.rel (%p517) target = $region56
        $region55: #{tpu_custom_call.1} parent=47 // pred_region
          %s520 = sand.u32 %s107, 1
          %s521 = scalar_lea.sflag [#allocation9], %s520
          %s522 = sand.u32 %s107, 1
          %s523 = smul.addr %s522, 8
          %s524 = scalar_lea.vmem [#allocation8], %s523
          %525 = dma.done %s521, 128
        $region56: #{tpu_custom_call.1} parent=47 // pred_fallthru
          _
      $region48: #{tpu_custom_call.1} parent=5 // pred_fallthru
        _
    $region6: #{tpu_custom_call.1} parent=1 // loop_footer
      %s24 = sadd.s32 1, %s20
    $region7: #{tpu_custom_call.1} parent=1 // loop_footer_branch
      %19 = sbr.rel target = $region3
    $region8: #{tpu_custom_call.1} parent=1 // loop_exit
      _
    %526 = vsyncpa [#allocation3], 1
    %s527 = scalar_lea.sflag [#allocation3], 1
    %528 = vsyncpa %s527, 1
    %529 = vsyncpa [#allocation6], 1
    %530 = vsyncpa [#allocation4], 1
    %s531 = scalar_lea.sflag [#allocation4], 1
    %532 = vsyncpa %s531, 1
    %533 = vsyncpa [#allocation9], 1
    %s534 = scalar_lea.sflag [#allocation9], 1
    %535 = vsyncpa %s534, 1

</llo_original>
